<compile_context>
chip_gen: v7x
topology: tpu7x:2x2x1
jax: 0.10.0
libtpu: 0.0.40
codegen_flags: <defaults>
</compile_context>

<pallas_src>
import functools

import jax
import jax.numpy as jnp
from jax.experimental import pallas as pl
from jax.experimental.pallas import tpu as pltpu

_LANE = 128
# Double-buffered (input + output) blocks per grid step cost ~4 * C * TW * itemsize.
# 8 MiB keeps us comfortably under every generation's default scoped VMEM limit
# (16 MiB v5e, 32 MiB v6e/v7x) with room for the interleave intermediate.
_VMEM_TILE_BUDGET = 8 * 1024 * 1024
# Measured mem-bound sweet spot for lane-dense tiles is ~512-1024 output lanes.
_TARGET_OUT_LANES = 1024


def _choose_w_tile(W: int, C: int, r: int, itemsize: int) -> int:
    """Pick the input-width tile TW (output tile is TW * r lanes)."""
    per_w_bytes = 4 * C * itemsize  # double-buffered in + out per input column
    if per_w_bytes * W <= _VMEM_TILE_BUDGET:
        # Whole width fits: one block per batch element, no masked stores,
        # block dims equal array dims so no 128-alignment requirement.
        return W
    # Tiled path: TW must be a multiple of 128 (so TW * r is too -> full vst).
    tw = max(_LANE, -(-_TARGET_OUT_LANES // r))          # ceil(target / r)
    tw = ((tw + _LANE - 1) // _LANE) * _LANE             # round up to lane granule
    tw_cap = max(_LANE, (_VMEM_TILE_BUDGET // per_w_bytes) // _LANE * _LANE)
    return min(tw, tw_cap)


def _pixel_shuffle_1d_kernel(x_ref, o_ref, *, upscale_factor: int, c_long: int):
    # x_ref: (C, TW) block, o_ref: (c_long, TW * r) block (batch dim squeezed).
    r = upscale_factor
    if r == 1:
        o_ref[...] = x_ref[...]
        return
    tw = x_ref.shape[-1]
    # Static sublane slices of the ref: the r channel groups, no leading reshape.
    groups = [x_ref[k * c_long:(k + 1) * c_long, :] for k in range(r)]
    # Lane interleave: stack -> (c_long, TW, r) -> (c_long, TW * r).
    # y[c, w*r + k] = groups[k][c, w] = x[k*c_long + c, w]
    # Note: a bf16 fast path via pltpu.pack_elementwise + pltpu.bitcast is possible
    # for power-of-two r; the generic interleave below is dtype-agnostic.
    y = jnp.stack(groups, axis=-1).reshape(c_long, tw * r)
    o_ref[...] = y.astype(o_ref.dtype)


def pixel_shuffle_1d(x: jax.Array, upscale_factor: int) -> jax.Array:
    """Pallas implementation of PixelShuffle1D.forward (NCW layout)."""
    B, C, W = x.shape
    assert C % upscale_factor == 0, "channels must be divisible by upscale_factor"
    r = upscale_factor
    c_long = C // r
    w_long = W * r
    itemsize = jnp.dtype(x.dtype).itemsize

    tw = _choose_w_tile(W, C, r, itemsize)
    n_w = pl.cdiv(W, tw)

    kernel = functools.partial(
        _pixel_shuffle_1d_kernel, upscale_factor=r, c_long=c_long)

    cost = pl.CostEstimate(
        flops=0,
        transcendentals=0,
        bytes_accessed=2 * B * C * W * itemsize,
    )

    return pl.pallas_call(
        kernel,
        out_shape=jax.ShapeDtypeStruct((B, c_long, w_long), x.dtype),
        grid_spec=pltpu.PrefetchScalarGridSpec(
            num_scalar_prefetch=0,
            grid=(B, n_w),
            in_specs=[
                pl.BlockSpec((pl.Squeezed(), C, tw), lambda b, w: (b, 0, w)),
            ],
            out_specs=pl.BlockSpec(
                (pl.Squeezed(), c_long, tw * r), lambda b, w: (b, 0, w)),
        ),
        compiler_params=pltpu.CompilerParams(
            dimension_semantics=("parallel", "parallel")),
        cost_estimate=cost,
    )(x)


def _reference_pixel_shuffle_1d(x: jax.Array, upscale_factor: int) -> jax.Array:
    """Pure-JAX reference mirroring the PyTorch view/permute/view exactly."""
    B, C, W = x.shape
    c_long = C // upscale_factor
    y = x.reshape(B, upscale_factor, c_long, W)
    y = jnp.transpose(y, (0, 2, 3, 1))
    return y.reshape(B, c_long, upscale_factor * W)


if __name__ == "__main__":
    key = jax.random.PRNGKey(0)

    # Case 1: r = 2 (matches module defaults at small scale).
    B, C, W, r = 2, 8, 16, 2
    x = jax.random.normal(key, (B, C, W), dtype=jnp.float32)
    out = jax.block_until_ready(pixel_shuffle_1d(x, r))
    ref = _reference_pixel_shuffle_1d(x, r)
    assert out.shape == (B, C // r, W * r)
    assert out.dtype == x.dtype
    assert jnp.allclose(out, ref), "Pallas PixelShuffle1D mismatch (r=2)"

    # Case 2: r = 4, different channel/width split.
    B2, C2, W2, r2 = 2, 16, 8, 4
    x2 = jax.random.normal(jax.random.PRNGKey(1), (B2, C2, W2), dtype=jnp.float32)
    out2 = jax.block_until_ready(pixel_shuffle_1d(x2, r2))
    ref2 = _reference_pixel_shuffle_1d(x2, r2)
    assert out2.shape == (B2, C2 // r2, W2 * r2)
    assert jnp.allclose(out2, ref2), "Pallas PixelShuffle1D mismatch (r=4)"

    print("KERNEL_OK")
</pallas_src>

<mosaic_0001>
module attributes {stable_mosaic.version = 11 : i64} {
  func.func @_pixel_shuffle_1d_kernel(%arg0: i32, %arg1: i32, %arg2: memref<1x8x16xf32, #tpu.memory_space<vmem>>, %arg3: memref<1x4x32xf32, #tpu.memory_space<vmem>>) attributes {dimension_semantics = [#tpu.dimension_semantics<parallel>, #tpu.dimension_semantics<parallel>], iteration_bounds = array<i64: 2, 1>, scalar_prefetch = 0 : i64, scratch_operands = 0 : i64, tpu.core_type = #tpu.core_type<tc>, window_params = [{transform_indices = @transform_0, window_bounds = array<i64: 1, 8, 16>}, {transform_indices = @transform_1, window_bounds = array<i64: 1, 4, 32>}]} {
    %c0 = arith.constant 0 : index
    %c0_0 = arith.constant 0 : index
    %c0_1 = arith.constant 0 : index
    %0 = vector.load %arg2[%c0, %c0_0, %c0_1] : memref<1x8x16xf32, #tpu.memory_space<vmem>>, vector<1x4x16xf32>
    %1 = vector.shape_cast %0 : vector<1x4x16xf32> to vector<4x16xf32>
    %c0_2 = arith.constant 0 : index
    %c4 = arith.constant 4 : index
    %c0_3 = arith.constant 0 : index
    %2 = vector.load %arg2[%c0_2, %c4, %c0_3] : memref<1x8x16xf32, #tpu.memory_space<vmem>>, vector<1x4x16xf32>
    %3 = vector.shape_cast %2 : vector<1x4x16xf32> to vector<4x16xf32>
    %4 = vector.shape_cast %1 : vector<4x16xf32> to vector<4x16x1xf32>
    %5 = vector.shape_cast %3 : vector<4x16xf32> to vector<4x16x1xf32>
    %6 = tpu.concatenate %4, %5 in 2 : vector<4x16x1xf32>, vector<4x16x1xf32> -> vector<4x16x2xf32>
    %7 = vector.shape_cast %6 : vector<4x16x2xf32> to vector<4x32xf32>
    %c0_4 = arith.constant 0 : index
    %c0_5 = arith.constant 0 : index
    %c0_6 = arith.constant 0 : index
    %8 = vector.load %arg3[%c0_4, %c0_5, %c0_6] : memref<1x4x32xf32, #tpu.memory_space<vmem>>, vector<1x4x32xf32>
    %9 = vector.shape_cast %8 : vector<1x4x32xf32> to vector<4x32xf32>
    %10 = vector.shape_cast %7 : vector<4x32xf32> to vector<1x4x32xf32>
    tpu.vector_store %arg3[%c0_4, %c0_5, %c0_6], %10 {strides = array<i32>} : memref<1x4x32xf32, #tpu.memory_space<vmem>>, vector<1x4x32xf32>,
    return
  }
  func.func @transform_0(%arg0: i32, %arg1: i32) -> (i32, i32, i32) {
    %c0_i32 = arith.constant 0 : i32
    %c0_i32_0 = arith.constant 0 : i32
    return %arg0, %c0_i32, %arg1 : i32, i32, i32
  }
  func.func @transform_1(%arg0: i32, %arg1: i32) -> (i32, i32, i32) {
    %c0_i32 = arith.constant 0 : i32
    %c0_i32_0 = arith.constant 0 : i32
    return %arg0, %c0_i32, %arg1 : i32, i32, i32
  }
}

</mosaic_0001>

<llo_original>
// kernel: tpu_custom_call.1
$region0: #{tpu_custom_call.1}
  #allocation0 [shape = 'u32[]', space=smem, size = 0x4, offset = 0x4, fixed_abs, tag = 'smem constant byte address 0x4 - core index']
  #allocation1 [shape = 'u32[144,128]{1,0:T(1,128)}', space=vmem, size = 0x12000, scoped, tag = 'internal scratch']
  %s0 = inlined_call_operand.hbm [shape: f32[2,8,16], index: 0, kind: input, shape index: {}]
  %s1 = inlined_call_operand.hbm [shape: f32[2,4,32], index: 1, kind: output, shape index: {}]
  %s2 = sld [smem:[#allocation0]]
  $region41: #{tpu_custom_call.1} parent=0
    _
  %s4 = ssub.s32 1, %s2
  %s5 = scalar_select 0, %s4, %s2
  $region1: #{tpu_custom_call.1} parent=0
    #allocation2 [shape = 'u8[8192]{0}', space=vmem, size = 0x2000, scoped, tag = 'input window, operand 0']
    #allocation3 [shape = 's32[2]{0}', space=sflag, size = 0x8, scoped, tag = 'scoped memory for tpu_custom_call.1']
    #allocation4 [shape = 's32[2]{0}', space=sflag, size = 0x8, scoped, tag = 'scoped memory for tpu_custom_call.1']
    #allocation5 [shape = 'u8[4096]{0}', space=vmem, size = 0x1000, scoped, tag = 'output window, operand 0']
    %6 = vsyncpa [#allocation3], 0
    %s7 = scalar_lea.sflag [#allocation3], 1
    %8 = vsyncpa %s7, 0
    %9 = vsyncpa [#allocation4], 0
    %s10 = scalar_lea.sflag [#allocation4], 1
    %11 = vsyncpa %s10, 0
    loop: start=0, step=1, limit=4
    $region2: #{tpu_custom_call.1} parent=1 // loop_pre_header
      _
    $region3: #{tpu_custom_call.1} parent=1 // loop_header
      %s13 = sphi 0, %s17
      %p14 = scmp.ge.s32.totalorder %s13, 4
      %s20 = sphi 0, %s32
      %s21 = sphi 0, %s28
      %s22 = sphi 0, %s20
      %s23 = sphi 0, %s21
      %s24 = sphi 0, %s22
      %s25 = sphi 0, %s23
      %s37 = sphi 0, %s39
      %s40 = sphi 0, %s37
      %s41 = sphi 0, %s40
      %s57 = sphi 0, %s41
      %s65 = sphi 0, %s67
      %s68 = sphi 0, %s65
      %s69 = sphi 0, %s68
      %s85 = sphi 0, %s69
    $region4: #{tpu_custom_call.1} parent=1 // loop_header_branch
      %16 = sbr.rel (%p14) target = $region8
    $region5: #{tpu_custom_call.1} parent=1 // loop_body
      %s18 = ssub.s32 %s13, 1
      %s19 = ssub.s32 %s13, 2
      %s26 = sadd.s32 1, %s21
      %p27 = scmp.ge.s32.totalorder %s26, 1
      %s28 = scalar_select %p27, 0, %s26
      %s29 = sadd.s32 1, %s20
      %s30 = scalar_select %p27, %s29, %s20
      %p31 = scmp.ge.s32.totalorder %s30, 2
      %s32 = scalar_select %p31, 0, %s30
      %s33 = ssub.s32 %s20, %s32
      %s34 = ssub.s32 %s21, %s28
      %s35 = sor.u32 %s33, %s34
      %p36 = scmp.eq.s32.totalorder %s35, 0
      %s38 = sadd.s32 %s37, 1
      %s39 = scalar_select %p36, %s37, %s38
      %p42 = pneg %p36
      %p43 = scmp.eq.s32.totalorder %s13, 1
      %p44 = por %p42, %p43
      %p45 = scmp.ne.s32.totalorder %s37, %s40
      %p46 = scmp.eq.s32.totalorder %s13, 0
      %p47 = por %p45, %p46
      %p48 = scmp.ne.s32.totalorder %s37, %s40
      %p49 = scmp.eq.s32.totalorder %s18, 1
      %p50 = por %p48, %p49
      %p51 = scmp.ne.s32.totalorder %s40, %s41
      %p52 = scmp.eq.s32.totalorder %s18, 0
      %p53 = por %p51, %p52
      %p54 = scmp.ne.s32.totalorder %s40, %s41
      %p55 = scmp.eq.s32.totalorder %s19, 1
      %p56 = por %p54, %p55
      %p58 = scmp.ne.s32.totalorder %s41, %s57
      %p59 = scmp.eq.s32.totalorder %s19, 0
      %p60 = por %p58, %p59
      %s61 = ssub.s32 %s20, %s32
      %s62 = ssub.s32 %s21, %s28
      %s63 = sor.u32 %s61, %s62
      %p64 = scmp.eq.s32.totalorder %s63, 0
      %s66 = sadd.s32 %s65, 1
      %s67 = scalar_select %p64, %s65, %s66
      %p70 = pneg %p64
      %p71 = scmp.eq.s32.totalorder %s13, 1
      %p72 = por %p70, %p71
      %p73 = scmp.ne.s32.totalorder %s65, %s68
      %p74 = scmp.eq.s32.totalorder %s13, 0
      %p75 = por %p73, %p74
      %p76 = scmp.ne.s32.totalorder %s65, %s68
      %p77 = scmp.eq.s32.totalorder %s18, 1
      %p78 = por %p76, %p77
      %p79 = scmp.ne.s32.totalorder %s68, %s69
      %p80 = scmp.eq.s32.totalorder %s18, 0
      %p81 = por %p79, %p80
      %p82 = scmp.ne.s32.totalorder %s68, %s69
      %p83 = scmp.eq.s32.totalorder %s19, 1
      %p84 = por %p82, %p83
      %p86 = scmp.ne.s32.totalorder %s69, %s85
      %p87 = scmp.eq.s32.totalorder %s19, 0
      %p88 = por %p86, %p87
      %p89 = scmp.le.s32.totalorder 1, %s13
      %p90 = scmp.lt.s32.totalorder %s13, 3
      %p91 = pnand %p89, %p90
      %p92 = pneg %p91
      // Predicated region
      $region9: #{tpu_custom_call.1} parent=5 // pred_check
        _
      $region10: #{tpu_custom_call.1} parent=5 // pred_check_branch
        %94 = sbr.rel (%p91) target = $region12
      $region11: #{tpu_custom_call.1} parent=5 // pred_region
        %s95 = ssub.s32 %s13, 1
      $region12: #{tpu_custom_call.1} parent=5 // pred_fallthru
        _
      %p96 = scmp.lt.s32.totalorder %s13, 2
      // Predicated region
      $region13: #{tpu_custom_call.1} parent=5 // pred_check
        %p97 = pneg %p96
      $region14: #{tpu_custom_call.1} parent=5 // pred_check_branch
        %99 = sbr.rel (%p97) target = $region16
      $region15: #{tpu_custom_call.1} parent=5 // pred_region
        // Predicated region
        $region17: #{tpu_custom_call.1} parent=15 // pred_check
          %p100 = pneg %p47
        $region18: #{tpu_custom_call.1} parent=15 // pred_check_branch
          %102 = sbr.rel (%p100) target = $region20
        $region19: #{tpu_custom_call.1} parent=15 // pred_region
          %s103 = sand.u32 %s37, 1
          %s104 = scalar_lea.sflag [#allocation3], %s103
          %s105 = sand.u32 %s37, 1
          %s106 = smul.addr %s105, 8
          %s107 = scalar_lea.vmem [#allocation2], %s106
          %s109 = ssub.s32 128, 128
          %110 = vsyncadd %s104, %s109
          %s111 = sadd.s32 %s21, %s20
          %s112 = smul.addr %s111, 128
          %s113 = scalar_lea.hbm %s0, %s112
          %s115 = sshll.u32 %s107, 4
          %s116 = int_to_ptr.vmem [resolvable:$true] %s115
          %118 = dma.hbm_to_vmem [thread:$0]  %s113, 128, %s116, %s104
        $region20: #{tpu_custom_call.1} parent=15 // pred_fallthru
          _
      $region16: #{tpu_custom_call.1} parent=5 // pred_fallthru
        _
      %p119 = scmp.le.s32.totalorder 1, %s13
      %p120 = scmp.lt.s32.totalorder %s13, 3
      %p121 = pnand %p119, %p120
      %p122 = pneg %p121
      // Predicated region
      $region21: #{tpu_custom_call.1} parent=5 // pred_check
        _
      $region22: #{tpu_custom_call.1} parent=5 // pred_check_branch
        %124 = sbr.rel (%p121) target = $region24
      $region23: #{tpu_custom_call.1} parent=5 // pred_region
        %s125 = ssub.s32 %s13, 1
        %s126 = sand.u32 %s40, 1
        %s127 = scalar_lea.sflag [#allocation3], %s126
        %s128 = sand.u32 %s40, 1
        %s129 = smul.addr %s128, 8
        %s130 = scalar_lea.vmem [#allocation2], %s129
        // Predicated region
        $region25: #{tpu_custom_call.1} parent=23 // pred_check
          %p131 = pneg %p53
        $region26: #{tpu_custom_call.1} parent=23 // pred_check_branch
          %133 = sbr.rel (%p131) target = $region28
        $region27: #{tpu_custom_call.1} parent=23 // pred_region
          %134 = dma.done %s127, 128
        $region28: #{tpu_custom_call.1} parent=23 // pred_fallthru
          _
        %s135 = sand.u32 %s40, 1
        %s136 = scalar_lea.sflag [#allocation3], %s135
        %s137 = sand.u32 %s40, 1
        %s138 = smul.addr %s137, 8
        %s139 = scalar_lea.vmem [#allocation2], %s138
        %p140 = pneg %p53
        %p141 = pneg %p50
        %p142 = pneg %p81
        %p143 = pneg %p78
        %s144 = sand.u32 %s68, 1
        %s145 = scalar_lea.sflag [#allocation4], %s144
        %s146 = sand.u32 %s68, 1
        %s147 = smul.addr %s146, 4
        %s148 = scalar_lea.vmem [#allocation5], %s147
        %v149 = vld [vmem:[%s130] sm:$0xf]
        %v150 = vld [vmem:[%s130 + $0x4] sm:$0xf]
        %v151 = vlaneseq
        %v152 = vshrl.u32 %v151, 7
        %v153 = vsub.s32 0, %v152
        %v154 = vrot.slane %v149, %v153
        %156 = vbcast.lane.b32.xlu0 %v154, 256
        %v157 = vpop.permute.xlu0 %156
        %s159 = sor.u32 256, 8
        %160 = vbcast.lane.b32.xlu0 %v154, %s159
        %v161 = vpop.permute.xlu0 %160
        %v162 = vlaneseq
        %v163 = vshrl.u32 %v162, 7
        %v164 = vsub.s32 1, %v163
        %v165 = vrot.slane %v149, %v164
        %167 = vbcast.lane.b32.xlu0 %v165, 256
        %v168 = vpop.permute.xlu0 %167
        %s170 = sor.u32 256, 8
        %171 = vbcast.lane.b32.xlu0 %v165, %s170
        %v172 = vpop.permute.xlu0 %171
        %v173 = vlaneseq
        %v174 = vshrl.u32 %v173, 7
        %v175 = vsub.s32 2, %v174
        %v176 = vrot.slane %v149, %v175
        %178 = vbcast.lane.b32.xlu0 %v176, 256
        %v179 = vpop.permute.xlu0 %178
        %s181 = sor.u32 256, 8
        %182 = vbcast.lane.b32.xlu0 %v176, %s181
        %v183 = vpop.permute.xlu0 %182
        %v184 = vlaneseq
        %v185 = vshrl.u32 %v184, 7
        %v186 = vsub.s32 3, %v185
        %v187 = vrot.slane %v149, %v186
        %189 = vbcast.lane.b32.xlu0 %v187, 256
        %v190 = vpop.permute.xlu0 %189
        %s192 = sor.u32 256, 8
        %193 = vbcast.lane.b32.xlu0 %v187, %s192
        %v194 = vpop.permute.xlu0 %193
        %v195 = vlaneseq
        %v196 = vshrl.u32 %v195, 7
        %v197 = vsub.s32 0, %v196
        %v198 = vrot.slane %v150, %v197
        %200 = vbcast.lane.b32.xlu0 %v198, 256
        %v201 = vpop.permute.xlu0 %200
        %s203 = sor.u32 256, 8
        %204 = vbcast.lane.b32.xlu0 %v198, %s203
        %v205 = vpop.permute.xlu0 %204
        %v206 = vlaneseq
        %v207 = vshrl.u32 %v206, 7
        %v208 = vsub.s32 1, %v207
        %v209 = vrot.slane %v150, %v208
        %211 = vbcast.lane.b32.xlu0 %v209, 256
        %v212 = vpop.permute.xlu0 %211
        %s214 = sor.u32 256, 8
        %215 = vbcast.lane.b32.xlu0 %v209, %s214
        %v216 = vpop.permute.xlu0 %215
        %v217 = vlaneseq
        %v218 = vshrl.u32 %v217, 7
        %v219 = vsub.s32 2, %v218
        %v220 = vrot.slane %v150, %v219
        %222 = vbcast.lane.b32.xlu0 %v220, 256
        %v223 = vpop.permute.xlu0 %222
        %s225 = sor.u32 256, 8
        %226 = vbcast.lane.b32.xlu0 %v220, %s225
        %v227 = vpop.permute.xlu0 %226
        %v228 = vlaneseq
        %v229 = vshrl.u32 %v228, 7
        %v230 = vsub.s32 3, %v229
        %v231 = vrot.slane %v150, %v230
        %233 = vbcast.lane.b32.xlu0 %v231, 256
        %v234 = vpop.permute.xlu0 %233
        %s236 = sor.u32 256, 8
        %237 = vbcast.lane.b32.xlu0 %v231, %s236
        %v238 = vpop.permute.xlu0 %237
        %vm239 = vcmask 7168
        %v240 = vsel %vm239, %v157, %v201
        %v241 = vsel %vm239, %v161, %v205
        %v242 = vsel %vm239, %v168, %v212
        %v243 = vsel %vm239, %v172, %v216
        %v244 = vsel %vm239, %v179, %v223
        %v245 = vsel %vm239, %v183, %v227
        %v246 = vsel %vm239, %v190, %v234
        %v247 = vsel %vm239, %v194, %v238
        %v248 = vcombine.low %v240, %v244
        %v249 = vcombine.high %v240, %v244
        %v251 = vunpack.c.l.s4 1983009808
        %v252 = vunpack.c.0.s8 %v251
        %v253 = vlaneseq
        %v254 = vshrl.u32 %v253, 7
        %v255 = vsub.s32 %v252, %v254
        %v256 = vrot.slane %v248, %v255
        %v258 = vunpack.c.l.s4 1983009808
        %v259 = vunpack.c.0.s8 %v258
        %v260 = vlaneseq
        %v261 = vshrl.u32 %v260, 7
        %v262 = vsub.s32 %v259, %v261
        %v263 = vrot.slane %v249, %v262
        %v264 = vcombine.low %v242, %v246
        %v265 = vcombine.high %v242, %v246
        %v267 = vunpack.c.l.s4 1983009808
        %v268 = vunpack.c.0.s8 %v267
        %v269 = vlaneseq
        %v270 = vshrl.u32 %v269, 7
        %v271 = vsub.s32 %v268, %v270
        %v272 = vrot.slane %v264, %v271
        %v274 = vunpack.c.l.s4 1983009808
        %v275 = vunpack.c.0.s8 %v274
        %v276 = vlaneseq
        %v277 = vshrl.u32 %v276, 7
        %v278 = vsub.s32 %v275, %v277
        %v279 = vrot.slane %v265, %v278
        %v280 = vcombine.low %v256, %v272
        %v281 = vcombine.high %v256, %v272
        %v283 = vunpack.c.l.s4 1934713408
        %v284 = vunpack.c.0.s8 %v283
        %v285 = vlaneseq
        %v286 = vshrl.u32 %v285, 7
        %v287 = vsub.s32 %v284, %v286
        %v288 = vrot.slane %v280, %v287
        %v290 = vunpack.c.l.s4 1934713408
        %v291 = vunpack.c.0.s8 %v290
        %v292 = vlaneseq
        %v293 = vshrl.u32 %v292, 7
        %v294 = vsub.s32 %v291, %v293
        %v295 = vrot.slane %v281, %v294
        %v296 = vcombine.low %v263, %v279
        %v297 = vcombine.high %v263, %v279
        %v299 = vunpack.c.l.s4 1934713408
        %v300 = vunpack.c.0.s8 %v299
        %v301 = vlaneseq
        %v302 = vshrl.u32 %v301, 7
        %v303 = vsub.s32 %v300, %v302
        %v304 = vrot.slane %v296, %v303
        %v306 = vunpack.c.l.s4 1934713408
        %v307 = vunpack.c.0.s8 %v306
        %v308 = vlaneseq
        %v309 = vshrl.u32 %v308, 7
        %v310 = vsub.s32 %v307, %v309
        %v311 = vrot.slane %v297, %v310
        %v312 = vcombine.high %v288, 0.0
        %v313 = vcombine.high %v295, 0.0
        %v314 = vcombine.high %v304, 0.0
        %v315 = vcombine.high %v311, 0.0
        %v316 = vcombine.low %v241, %v245
        %v317 = vcombine.high %v241, %v245
        %v319 = vunpack.c.l.s4 1983009808
        %v320 = vunpack.c.0.s8 %v319
        %v321 = vlaneseq
        %v322 = vshrl.u32 %v321, 7
        %v323 = vsub.s32 %v320, %v322
        %v324 = vrot.slane %v316, %v323
        %v326 = vunpack.c.l.s4 1983009808
        %v327 = vunpack.c.0.s8 %v326
        %v328 = vlaneseq
        %v329 = vshrl.u32 %v328, 7
        %v330 = vsub.s32 %v327, %v329
        %v331 = vrot.slane %v317, %v330
        %v332 = vcombine.low %v243, %v247
        %v333 = vcombine.high %v243, %v247
        %v335 = vunpack.c.l.s4 1983009808
        %v336 = vunpack.c.0.s8 %v335
        %v337 = vlaneseq
        %v338 = vshrl.u32 %v337, 7
        %v339 = vsub.s32 %v336, %v338
        %v340 = vrot.slane %v332, %v339
        %v342 = vunpack.c.l.s4 1983009808
        %v343 = vunpack.c.0.s8 %v342
        %v344 = vlaneseq
        %v345 = vshrl.u32 %v344, 7
        %v346 = vsub.s32 %v343, %v345
        %v347 = vrot.slane %v333, %v346
        %v348 = vcombine.low %v324, %v340
        %v349 = vcombine.high %v324, %v340
        %v351 = vunpack.c.l.s4 1934713408
        %v352 = vunpack.c.0.s8 %v351
        %v353 = vlaneseq
        %v354 = vshrl.u32 %v353, 7
        %v355 = vsub.s32 %v352, %v354
        %v356 = vrot.slane %v348, %v355
        %v358 = vunpack.c.l.s4 1934713408
        %v359 = vunpack.c.0.s8 %v358
        %v360 = vlaneseq
        %v361 = vshrl.u32 %v360, 7
        %v362 = vsub.s32 %v359, %v361
        %v363 = vrot.slane %v349, %v362
        %v364 = vcombine.low %v331, %v347
        %v365 = vcombine.high %v331, %v347
        %v367 = vunpack.c.l.s4 1934713408
        %v368 = vunpack.c.0.s8 %v367
        %v369 = vlaneseq
        %v370 = vshrl.u32 %v369, 7
        %v371 = vsub.s32 %v368, %v370
        %v372 = vrot.slane %v364, %v371
        %v374 = vunpack.c.l.s4 1934713408
        %v375 = vunpack.c.0.s8 %v374
        %v376 = vlaneseq
        %v377 = vshrl.u32 %v376, 7
        %v378 = vsub.s32 %v375, %v377
        %v379 = vrot.slane %v365, %v378
        %v380 = vcombine.high %v356, 0.0
        %v381 = vcombine.high %v363, 0.0
        %v382 = vcombine.high %v372, 0.0
        %v383 = vcombine.high %v379, 0.0
        %385 = vrot.lane.b32.xlu0 %v312, 2
        %v386 = vpop.permute.xlu0 %385
        %389 = vrot.lane.b32.xlu0 %v295, 4
        %v390 = vpop.permute.xlu0 %389
        %393 = vrot.lane.b32.xlu0 %v313, 6
        %v394 = vpop.permute.xlu0 %393
        %397 = vrot.lane.b32.xlu0 %v304, 8
        %v398 = vpop.permute.xlu0 %397
        %401 = vrot.lane.b32.xlu0 %v314, 10
        %v402 = vpop.permute.xlu0 %401
        %405 = vrot.lane.b32.xlu0 %v311, 12
        %v406 = vpop.permute.xlu0 %405
        %409 = vrot.lane.b32.xlu0 %v315, 14
        %v410 = vpop.permute.xlu0 %409
        %413 = vrot.lane.b32.xlu0 %v356, 16
        %v414 = vpop.permute.xlu0 %413
        %417 = vrot.lane.b32.xlu0 %v380, 18
        %v418 = vpop.permute.xlu0 %417
        %421 = vrot.lane.b32.xlu0 %v363, 20
        %v422 = vpop.permute.xlu0 %421
        %425 = vrot.lane.b32.xlu0 %v381, 22
        %v426 = vpop.permute.xlu0 %425
        %429 = vrot.lane.b32.xlu0 %v372, 24
        %v430 = vpop.permute.xlu0 %429
        %433 = vrot.lane.b32.xlu0 %v382, 26
        %v434 = vpop.permute.xlu0 %433
        %437 = vrot.lane.b32.xlu0 %v379, 28
        %v438 = vpop.permute.xlu0 %437
        %441 = vrot.lane.b32.xlu0 %v383, 30
        %v442 = vpop.permute.xlu0 %441
        %vm444 = vcmask 15360
        %v445 = vsel %vm444, %v288, %v386
        %vm446 = vcmask 31744
        %v447 = vsel %vm446, %v445, %v390
        %vm448 = vcmask 48128
        %v449 = vsel %vm448, %v447, %v394
        %vm450 = vcmask 64512
        %v451 = vsel %vm450, %v449, %v398
        %vm452 = vcmask 80896
        %v453 = vsel %vm452, %v451, %v402
        %vm454 = vcmask 97280
        %v455 = vsel %vm454, %v453, %v406
        %vm456 = vcmask 113664
        %v457 = vsel %vm456, %v455, %v410
        %vm458 = vcmask 130048
        %v459 = vsel %vm458, %v457, %v414
        %vm460 = vcmask 146432
        %v461 = vsel %vm460, %v459, %v418
        %vm462 = vcmask 162816
        %v463 = vsel %vm462, %v461, %v422
        %vm464 = vcmask 179200
        %v465 = vsel %vm464, %v463, %v426
        %vm466 = vcmask 195584
        %v467 = vsel %vm466, %v465, %v430
        %vm468 = vcmask 211968
        %v469 = vsel %vm468, %v467, %v434
        %vm470 = vcmask 228352
        %v471 = vsel %vm470, %v469, %v438
        %vm472 = vcmask 244736
        %v473 = vsel %vm472, %v471, %v442
        %vm474 = vcmask 257024
        %475 = vst.msk [vmem:[%s148] sm:$0xf] %vm474, %v473
        %s476 = sand.u32 %s68, 1
        %s477 = scalar_lea.sflag [#allocation4], %s476
        %s478 = sand.u32 %s68, 1
        %s479 = smul.addr %s478, 4
        %s480 = scalar_lea.vmem [#allocation5], %s479
        // Predicated region
        $region29: #{tpu_custom_call.1} parent=23 // pred_check
          %p481 = pneg %p78
        $region30: #{tpu_custom_call.1} parent=23 // pred_check_branch
          %483 = sbr.rel (%p481) target = $region32
        $region31: #{tpu_custom_call.1} parent=23 // pred_region
          %s485 = ssub.s32 64, 64
          %486 = vsyncadd %s477, %s485
          %s487 = sadd.s32 %s23, %s22
          %s488 = smul.addr %s487, 64
          %s489 = scalar_lea.hbm %s1, %s488
          %s491 = sshll.u32 %s480, 4
          %s492 = int_to_ptr.vmem [resolvable:$true] %s491
          %494 = dma.vmem_to_hbm [thread:$0]  %s492, 64, %s489, %s477
        $region32: #{tpu_custom_call.1} parent=23 // pred_fallthru
          _
      $region24: #{tpu_custom_call.1} parent=5 // pred_fallthru
        _
      %p495 = scmp.le.s32.totalorder 2, %s13
      // Predicated region
      $region33: #{tpu_custom_call.1} parent=5 // pred_check
        %p496 = pneg %p495
      $region34: #{tpu_custom_call.1} parent=5 // pred_check_branch
        %498 = sbr.rel (%p496) target = $region36
      $region35: #{tpu_custom_call.1} parent=5 // pred_region
        %s499 = ssub.s32 %s13, 2
        // Predicated region
        $region37: #{tpu_custom_call.1} parent=35 // pred_check
          %p500 = pneg %p84
        $region38: #{tpu_custom_call.1} parent=35 // pred_check_branch
          %502 = sbr.rel (%p500) target = $region40
        $region39: #{tpu_custom_call.1} parent=35 // pred_region
          %s503 = sand.u32 %s69, 1
          %s504 = scalar_lea.sflag [#allocation4], %s503
          %s505 = sand.u32 %s69, 1
          %s506 = smul.addr %s505, 4
          %s507 = scalar_lea.vmem [#allocation5], %s506
          %508 = dma.done %s504, 64
        $region40: #{tpu_custom_call.1} parent=35 // pred_fallthru
          _
      $region36: #{tpu_custom_call.1} parent=5 // pred_fallthru
        _
    $region6: #{tpu_custom_call.1} parent=1 // loop_footer
      %s17 = sadd.s32 1, %s13
    $region7: #{tpu_custom_call.1} parent=1 // loop_footer_branch
      %12 = sbr.rel target = $region3
    $region8: #{tpu_custom_call.1} parent=1 // loop_exit
      _
    %509 = vsyncpa [#allocation3], 1
    %s510 = scalar_lea.sflag [#allocation3], 1
    %511 = vsyncpa %s510, 1
    %512 = vsyncpa [#allocation4], 1
    %s513 = scalar_lea.sflag [#allocation4], 1
    %514 = vsyncpa %s513, 1

</llo_original>
